<compile_context>
chip_gen: v7x
topology: tpu7x:2x2x1
jax: 0.10.0
libtpu: 0.0.40
codegen_flags: <defaults>
</compile_context>

<pallas_src>
import jax
import jax.numpy as jnp
from jax.experimental import pallas as pl
from jax.experimental.pallas import tpu as pltpu


# ---------------------------------------------------------------- kernels
def _swiglu_partial(x_ref, w1_ref, w3_ref, w2_ref):
    """Partial down-projection for this (row tile, intermediate block) pair, f32."""
    x = x_ref[...]                                                     # (TILE_N, C)
    a = jnp.dot(x, w1_ref[...], preferred_element_type=jnp.float32)   # w1(x) block
    g = jnp.dot(x, w3_ref[...], preferred_element_type=jnp.float32)   # w3(x) block
    h = a * (g * jax.nn.sigmoid(g))                                    # w1(x)*silu(w3(x)), f32
    return jnp.dot(h.astype(w2_ref.dtype), w2_ref[...],
                   preferred_element_type=jnp.float32)                 # (TILE_N, C)


def swiglu_kernel_f32_out(x_ref, w1_ref, w3_ref, w2_ref, o_ref):
    # Output block index is constant across the j (intermediate) grid axis, so
    # o_ref stays resident in VMEM: accumulate into it directly (f32 output).
    @pl.when(pl.program_id(1) == 0)
    def _():
        o_ref[...] = jnp.zeros_like(o_ref)

    o_ref[...] += _swiglu_partial(x_ref, w1_ref, w3_ref, w2_ref)


def swiglu_kernel_acc(x_ref, w1_ref, w3_ref, w2_ref, o_ref, acc_ref):
    # Narrow output dtype (e.g. bf16): keep an f32 accumulator scratch.
    j = pl.program_id(1)

    @pl.when(j == 0)
    def _():
        acc_ref[...] = jnp.zeros_like(acc_ref)

    acc_ref[...] += _swiglu_partial(x_ref, w1_ref, w3_ref, w2_ref)

    @pl.when(j == pl.num_programs(1) - 1)
    def _():
        o_ref[...] = acc_ref[...].astype(o_ref.dtype)


# ---------------------------------------------------------------- sizing
def _physical_vmem_bytes():
    """Physical VMEM per TensorCore (128 MiB v5e/v6e, 64 MiB v7x)."""
    try:
        return int(pltpu.get_tpu_info().vmem_capacity_bytes)
    except Exception:
        return 64 * 1024 * 1024   # conservative fallback (v7x per-core size)


def _footprint_bytes(tile_n, tile_i, C, x_it, w_it, o_it, use_scratch):
    # Double-buffered streamed blocks + (optional) resident f32 accumulator.
    x_b = 2 * tile_n * C * x_it
    w_b = 2 * (C * tile_i + C * tile_i + tile_i * C) * w_it     # w1 + w3 + w2
    o_b = 2 * tile_n * C * o_it
    acc_b = tile_n * C * 4 if use_scratch else 0
    return x_b + w_b + o_b + acc_b


def _pick_tiles(N, I, C, x_it, w_it, o_it, use_scratch, budget):
    # Intermediate tiles: multiples of 128 only (lane-aligned slices, MXU-friendly K).
    tile_i_cands = [c for c in (512, 256, 128) if I % c == 0] or [I]
    tile_n_cands = [c for c in (2048, 1024, 512, 256, 128, 64, 32, 16, 8)
                    if N % c == 0] or [N]
    # Keep >= 2 row blocks when N is large enough that it costs little, so the
    # "parallel" row axis can shard across v7x's 2 TensorCores (no-op otherwise).
    capped = [c for c in tile_n_cands if c <= max(N // 2, 512)]
    if capped:
        tile_n_cands = capped
    # Shrink tile_i before tile_n: weight HBM traffic scales with N / tile_n.
    for tn in tile_n_cands:
        for ti in tile_i_cands:
            if _footprint_bytes(tn, ti, C, x_it, w_it, o_it, use_scratch) <= budget:
                return tn, ti
    return tile_n_cands[-1], tile_i_cands[-1]


# ---------------------------------------------------------------- wrapper
def swiglu(x, w1, w3, w2):
    """x: (..., C); w1, w3: (C, I); w2: (I, C)  (i.e. torch weight.T). Returns (..., C)."""
    orig_shape = x.shape
    C = orig_shape[-1]
    I = w1.shape[1]
    N = 1
    for d in orig_shape[:-1]:
        N *= d
    x2d = x.reshape(N, C)

    out_dtype = x.dtype
    use_scratch = out_dtype != jnp.float32
    x_it = jnp.dtype(x.dtype).itemsize
    w_it = jnp.dtype(w1.dtype).itemsize
    o_it = jnp.dtype(out_dtype).itemsize

    phys_vmem = _physical_vmem_bytes()
    tile_n, tile_i = _pick_tiles(N, I, C, x_it, w_it, o_it, use_scratch,
                                 budget=int(0.70 * phys_vmem))
    n_i, n_j = N // tile_n, I // tile_i

    footprint = _footprint_bytes(tile_n, tile_i, C, x_it, w_it, o_it, use_scratch)
    vmem_limit = int(min(max(1.25 * footprint, 16 * 1024 * 1024),
                         0.85 * phys_vmem))

    in_specs = [
        pl.BlockSpec((tile_n, C), lambda i, j: (i, 0)),   # x row tile
        pl.BlockSpec((C, tile_i), lambda i, j: (0, j)),   # w1 column block
        pl.BlockSpec((C, tile_i), lambda i, j: (0, j)),   # w3 column block
        pl.BlockSpec((tile_i, C), lambda i, j: (j, 0)),   # w2 row block
    ]
    out_spec = pl.BlockSpec((tile_n, C), lambda i, j: (i, 0))

    kernel = swiglu_kernel_acc if use_scratch else swiglu_kernel_f32_out
    scratch = [pltpu.VMEM((tile_n, C), jnp.float32)] if use_scratch else []

    out2d = pl.pallas_call(
        kernel,
        out_shape=jax.ShapeDtypeStruct((N, C), out_dtype),
        grid_spec=pltpu.PrefetchScalarGridSpec(
            num_scalar_prefetch=0,
            grid=(n_i, n_j),
            in_specs=in_specs,
            out_specs=out_spec,
            scratch_shapes=scratch,
        ),
        compiler_params=pltpu.CompilerParams(
            dimension_semantics=("parallel", "arbitrary"),
            vmem_limit_bytes=vmem_limit,
        ),
    )(x2d, w1, w3, w2)

    return out2d.reshape(orig_shape)


# ---------------------------------------------------------------- reference
def swiglu_reference(x, w1, w3, w2):
    return ((x @ w1) * jax.nn.silu(x @ w3)) @ w2


# ---------------------------------------------------------------- main
if __name__ == "__main__":
    B, T, C = 2, 8, 32          # batch, seq, n_embd
    I = 128                     # intermediate_size

    key = jax.random.PRNGKey(0)
    kx, k1, k3, k2 = jax.random.split(key, 4)

    x = jax.random.normal(kx, (B, T, C), dtype=jnp.float32)
    # Weights stored as (in, out) so the kernel computes x @ W
    # (equivalent to PyTorch nn.Linear's x @ weight.T).
    w1 = 0.02 * jax.random.normal(k1, (C, I), dtype=jnp.float32)
    w3 = 0.02 * jax.random.normal(k3, (C, I), dtype=jnp.float32)
    w2 = 0.02 * jax.random.normal(k2, (I, C), dtype=jnp.float32)

    out = jax.block_until_ready(swiglu(x, w1, w3, w2))
    ref = jax.block_until_ready(swiglu_reference(x, w1, w3, w2))

    assert out.shape == (B, T, C)
    assert jnp.allclose(out, ref, atol=1e-4, rtol=1e-4), (
        float(jnp.max(jnp.abs(out - ref))))

    print("KERNEL_OK")
</pallas_src>

<mosaic_0001>
module attributes {stable_mosaic.version = 11 : i64} {
  func.func @swiglu_kernel_f32_out(%arg0: i32, %arg1: i32, %arg2: memref<16x32xf32, #tpu.memory_space<vmem>>, %arg3: memref<32x128xf32, #tpu.memory_space<vmem>>, %arg4: memref<32x128xf32, #tpu.memory_space<vmem>>, %arg5: memref<128x32xf32, #tpu.memory_space<vmem>>, %arg6: memref<16x32xf32, #tpu.memory_space<vmem>>) attributes {dimension_semantics = [#tpu.dimension_semantics<parallel>, #tpu.dimension_semantics<arbitrary>], iteration_bounds = array<i64: 1, 1>, scalar_prefetch = 0 : i64, scratch_operands = 0 : i64, tpu.core_type = #tpu.core_type<tc>, window_params = [{transform_indices = @transform_0, window_bounds = array<i64: 16, 32>}, {transform_indices = @transform_1, window_bounds = array<i64: 32, 128>}, {transform_indices = @transform_2, window_bounds = array<i64: 32, 128>}, {transform_indices = @transform_3, window_bounds = array<i64: 128, 32>}, {transform_indices = @transform_4, window_bounds = array<i64: 16, 32>}]} {
    %c0_i32 = arith.constant 0 : i32
    %0 = arith.cmpi eq, %arg1, %c0_i32 : i32
    %1 = arith.extui %0 : i1 to i32
    %c0_i32_0 = arith.constant 0 : i32
    %2 = arith.cmpi ne, %1, %c0_i32_0 : i32
    scf.if %2 {
      %cst_15 = arith.constant 0.000000e+00 : f32
      %20 = vector.broadcast %cst_15 : f32 to vector<16x32xf32>
      %c0_16 = arith.constant 0 : index
      %c0_17 = arith.constant 0 : index
      %21 = vector.load %arg6[%c0_16, %c0_17] : memref<16x32xf32, #tpu.memory_space<vmem>>, vector<16x32xf32>
      tpu.vector_store %arg6[%c0_16, %c0_17], %20 {strides = array<i32>} : memref<16x32xf32, #tpu.memory_space<vmem>>, vector<16x32xf32>,
    } else {
    }
    %c0 = arith.constant 0 : index
    %c0_1 = arith.constant 0 : index
    %3 = vector.load %arg6[%c0, %c0_1] : memref<16x32xf32, #tpu.memory_space<vmem>>, vector<16x32xf32>
    %c0_2 = arith.constant 0 : index
    %c0_3 = arith.constant 0 : index
    %4 = vector.load %arg2[%c0_2, %c0_3] : memref<16x32xf32, #tpu.memory_space<vmem>>, vector<16x32xf32>
    %c0_4 = arith.constant 0 : index
    %c0_5 = arith.constant 0 : index
    %5 = vector.load %arg3[%c0_4, %c0_5] : memref<32x128xf32, #tpu.memory_space<vmem>>, vector<32x128xf32>
    %cst = arith.constant dense<0.000000e+00> : vector<16x128xf32>
    %6 = tpu.matmul %4, %5, %cst {dimension_numbers = #tpu.dot_dimension_numbers<[1], [0], [0], [1], [0, 0, 1, 1], [], []>} : vector<16x32xf32>, vector<32x128xf32>, vector<16x128xf32> -> vector<16x128xf32>
    %c0_6 = arith.constant 0 : index
    %c0_7 = arith.constant 0 : index
    %7 = vector.load %arg4[%c0_6, %c0_7] : memref<32x128xf32, #tpu.memory_space<vmem>>, vector<32x128xf32>
    %cst_8 = arith.constant dense<0.000000e+00> : vector<16x128xf32>
    %8 = tpu.matmul %4, %7, %cst_8 {dimension_numbers = #tpu.dot_dimension_numbers<[1], [0], [0], [1], [0, 0, 1, 1], [], []>} : vector<16x32xf32>, vector<32x128xf32>, vector<16x128xf32> -> vector<16x128xf32>
    %9 = arith.negf %8 : vector<16x128xf32>
    %10 = math.exp %9 : vector<16x128xf32>
    %cst_9 = arith.constant 1.000000e+00 : f32
    %11 = vector.broadcast %cst_9 : f32 to vector<16x128xf32>
    %12 = arith.addf %11, %10 : vector<16x128xf32>
    %13 = arith.divf %11, %12 : vector<16x128xf32>
    %14 = arith.mulf %8, %13 : vector<16x128xf32>
    %15 = arith.mulf %6, %14 : vector<16x128xf32>
    %c0_10 = arith.constant 0 : index
    %c0_11 = arith.constant 0 : index
    %16 = vector.load %arg5[%c0_10, %c0_11] : memref<128x32xf32, #tpu.memory_space<vmem>>, vector<128x32xf32>
    %cst_12 = arith.constant dense<0.000000e+00> : vector<16x32xf32>
    %17 = tpu.matmul %15, %16, %cst_12 {dimension_numbers = #tpu.dot_dimension_numbers<[1], [0], [0], [1], [0, 0, 1, 1], [], []>} : vector<16x128xf32>, vector<128x32xf32>, vector<16x32xf32> -> vector<16x32xf32>
    %18 = arith.addf %3, %17 : vector<16x32xf32>
    %c0_13 = arith.constant 0 : index
    %c0_14 = arith.constant 0 : index
    %19 = vector.load %arg6[%c0_13, %c0_14] : memref<16x32xf32, #tpu.memory_space<vmem>>, vector<16x32xf32>
    tpu.vector_store %arg6[%c0_13, %c0_14], %18 {strides = array<i32>} : memref<16x32xf32, #tpu.memory_space<vmem>>, vector<16x32xf32>,
    return
  }
  func.func @transform_0(%arg0: i32, %arg1: i32) -> (i32, i32) {
    %c0_i32 = arith.constant 0 : i32
    %c0_i32_0 = arith.constant 0 : i32
    return %arg0, %c0_i32 : i32, i32
  }
  func.func @transform_1(%arg0: i32, %arg1: i32) -> (i32, i32) {
    %c0_i32 = arith.constant 0 : i32
    %c0_i32_0 = arith.constant 0 : i32
    return %c0_i32, %arg1 : i32, i32
  }
  func.func @transform_2(%arg0: i32, %arg1: i32) -> (i32, i32) {
    %c0_i32 = arith.constant 0 : i32
    %c0_i32_0 = arith.constant 0 : i32
    return %c0_i32, %arg1 : i32, i32
  }
  func.func @transform_3(%arg0: i32, %arg1: i32) -> (i32, i32) {
    %c0_i32 = arith.constant 0 : i32
    %c0_i32_0 = arith.constant 0 : i32
    return %arg1, %c0_i32 : i32, i32
  }
  func.func @transform_4(%arg0: i32, %arg1: i32) -> (i32, i32) {
    %c0_i32 = arith.constant 0 : i32
    %c0_i32_0 = arith.constant 0 : i32
    return %arg0, %c0_i32 : i32, i32
  }
}

</mosaic_0001>

<llo_original>
// kernel: tpu_custom_call.1
$region0: #{tpu_custom_call.1}
  #allocation0 [shape = 'u32[]', space=smem, size = 0x4, offset = 0x4, fixed_abs, tag = 'smem constant byte address 0x4 - core index']
  #allocation1 [shape = 'u32[144,128]{1,0:T(1,128)}', space=vmem, size = 0x12000, scoped, tag = 'internal scratch']
  %s0 = inlined_call_operand.vmem [shape: f32[16,32], index: 0, kind: input, shape index: {}]
  %s1 = inlined_call_operand.vmem [shape: f32[32,128], index: 1, kind: input, shape index: {}]
  %s2 = inlined_call_operand.vmem [shape: f32[32,128], index: 2, kind: input, shape index: {}]
  %s3 = inlined_call_operand.vmem [shape: f32[128,32], index: 3, kind: input, shape index: {}]
  %s4 = inlined_call_operand.hbm [shape: f32[16,32], index: 4, kind: output, shape index: {}]
  %s5 = sld [smem:[#allocation0]]
  $region30: #{tpu_custom_call.1} parent=0
    _
  %s7 = ssub.s32 1, %s5
  %s8 = scalar_select 0, %s7, %s5
  $region1: #{tpu_custom_call.1} parent=0
    #allocation2 [shape = 'u8[8192]{0}', space=vmem, size = 0x2000, scoped, tag = 'output window, operand 0, single buffered']
    #allocation3 [shape = 's32[1]{0}', space=sflag, size = 0x4, scoped, tag = 'scoped memory for tpu_custom_call.1']
    %9 = vsyncpa [#allocation3], 0
    // Predicated region
    $region2: #{tpu_custom_call.1} parent=1 // pred_check
      _
    $region3: #{tpu_custom_call.1} parent=1 // pred_check_branch
      %11 = sbr.rel (0) target = $region5
    $region4: #{tpu_custom_call.1} parent=1 // pred_region
      _
    $region5: #{tpu_custom_call.1} parent=1 // pred_fallthru
      _
    // Predicated region
    $region6: #{tpu_custom_call.1} parent=1 // pred_check
      _
    $region7: #{tpu_custom_call.1} parent=1 // pred_check_branch
      %13 = sbr.rel (0) target = $region9
    $region8: #{tpu_custom_call.1} parent=1 // pred_region
      _
    $region9: #{tpu_custom_call.1} parent=1 // pred_fallthru
      _
    // Predicated region
    $region10: #{tpu_custom_call.1} parent=1 // pred_check
      _
    $region11: #{tpu_custom_call.1} parent=1 // pred_check_branch
      %15 = sbr.rel (0) target = $region13
    $region12: #{tpu_custom_call.1} parent=1 // pred_region
      _
    $region13: #{tpu_custom_call.1} parent=1 // pred_fallthru
      _
    // Predicated region
    $region14: #{tpu_custom_call.1} parent=1 // pred_check
      _
    $region15: #{tpu_custom_call.1} parent=1 // pred_check_branch
      %17 = sbr.rel (0) target = $region17
    $region16: #{tpu_custom_call.1} parent=1 // pred_region
      _
    $region17: #{tpu_custom_call.1} parent=1 // pred_fallthru
      _
    %p18 = scmp.eq.s32.totalorder 0, 0
    // Predicated region
    $region18: #{tpu_custom_call.1} parent=1 // pred_check
      %p19 = pneg %p18
    $region19: #{tpu_custom_call.1} parent=1 // pred_check_branch
      %21 = sbr.rel (%p19) target = $region21
    $region20: #{tpu_custom_call.1} parent=1 // pred_region
      %vm22 = vcmask 261120
      %23 = vst.msk [vmem:[#allocation2] sm:$0xff] %vm22, 0.0
      %24 = vst.msk [vmem:[#allocation2 + $0x8] sm:$0xff] %vm22, 0.0
    $region21: #{tpu_custom_call.1} parent=1 // pred_fallthru
      _
    %v25 = vld [vmem:[#allocation2] sm:$0xff]
    %v26 = vld [vmem:[#allocation2 + $0x8] sm:$0xff]
    %v27 = vld [vmem:[%s0] sm:$0xff]
    %v28 = vld [vmem:[%s0 + $0x8] sm:$0xff]
    %v29 = vld [vmem:[%s1] sm:$0xff]
    %v30 = vld [vmem:[%s1 + $0x8] sm:$0xff]
    %v31 = vld [vmem:[%s1 + $0x10] sm:$0xff]
    %v32 = vld [vmem:[%s1 + $0x18] sm:$0xff]
    %vm33 = vcmask 261120
    %v35 = vsel %vm33, %v27, 0
    %v38 = vsel %vm33, %v28, 0
    %40 = vmatprep.subr.mxu0 0.0
    %41 = vmatpush1.msra.mxu0 %v29
    %42 = vmatprep.subr.mxu0 0.0
    %43 = vmatpush1.msra.mxu0 %v30
    %44 = vmatprep.subr.mxu0 0.0
    %45 = vmatpush1.msra.mxu0 %v31
    %46 = vmatprep.subr.mxu0 0.0
    %47 = vmatpush1.msra.mxu0 %v32
    %48 = vmatprep.subr.mxu0 0.0
    %49 = vmatpush1.msra.mxu0 0.0
    %50 = vmatprep.subr.mxu0 0.0
    %51 = vmatpush1.msra.mxu0 0.0
    %52 = vmatprep.subr.mxu0 0.0
    %53 = vmatpush1.msra.mxu0 0.0
    %54 = vmatprep.subr.mxu0 0.0
    %55 = vmatpush1.msra.mxu0 0.0
    %56 = vmatprep.subr.mxu0 0.0
    %57 = vmatpush1.msra.mxu0 0.0
    %58 = vmatprep.subr.mxu0 0.0
    %59 = vmatpush1.msra.mxu0 0.0
    %60 = vmatprep.subr.mxu0 0.0
    %61 = vmatpush1.msra.mxu0 0.0
    %62 = vmatprep.subr.mxu0 0.0
    %63 = vmatpush1.msra.mxu0 0.0
    %64 = vmatprep.subr.mxu0 0.0
    %65 = vmatpush1.msra.mxu0 0.0
    %66 = vmatprep.subr.mxu0 0.0
    %67 = vmatpush1.msra.mxu0 0.0
    %68 = vmatprep.subr.mxu0 0.0
    %69 = vmatpush1.msra.mxu0 0.0
    %70 = vmatprep.subr.mxu0 0.0
    %71 = vmatpush1.msra.mxu0 0.0
    %72 = vmatprep.subr.mxu0 0.0
    %73 = vmatpush1.msra.mxu0 0.0
    %74 = vmatprep.subr.mxu0 0.0
    %75 = vmatpush1.msra.mxu0 0.0
    %76 = vmatprep.subr.mxu0 0.0
    %77 = vmatpush1.msra.mxu0 0.0
    %78 = vmatprep.subr.mxu0 0.0
    %79 = vmatpush1.msra.mxu0 0.0
    %80 = vmatprep.subr.mxu0 0.0
    %81 = vmatpush1.msra.mxu0 0.0
    %82 = vmatprep.subr.mxu0 0.0
    %83 = vmatpush1.msra.mxu0 0.0
    %84 = vmatprep.subr.mxu0 0.0
    %85 = vmatpush1.msra.mxu0 0.0
    %86 = vmatprep.subr.mxu0 0.0
    %87 = vmatpush1.msra.mxu0 0.0
    %88 = vmatprep.subr.mxu0 0.0
    %89 = vmatpush1.msra.mxu0 0.0
    %90 = vmatprep.subr.mxu0 0.0
    %91 = vmatpush1.msra.mxu0 0.0
    %92 = vmatprep.subr.mxu0 0.0
    %93 = vmatpush1.msra.mxu0 0.0
    %94 = vmatprep.subr.mxu0 0.0
    %95 = vmatpush1.msra.mxu0 0.0
    %96 = vmatprep.subr.mxu0 0.0
    %97 = vmatpush1.msra.mxu0 0.0
    %98 = vmatprep.subr.mxu0 0.0
    %99 = vmatpush1.msra.mxu0 0.0
    %100 = vmatprep.subr.mxu0 0.0
    %101 = vmatpush1.msra.mxu0 0.0
    %102 = vmatprep.subr.mxu0 0.0
    %103 = vmatpush1.msra.mxu0 0.0
    %104 = vmatprep.mubr.f32.mxu0 0.0
    %105 = vmatmul.mubr.f32.gmra.mrb[0].mxu0 %v35
    %v106 = vpop.f32.mrb[0].mxu0
    %v107 = vadd.f32 0.0, %v106
    %v108 = vpop.f32.mrb[0].mxu0
    %109 = vmatprep.mubr.f32.mxu0 0.0
    %110 = vmatmul.mubr.f32.gmra.mrb[0].mxu0 %v38
    %v111 = vpop.f32.mrb[0].mxu0
    %v112 = vadd.f32 0.0, %v111
    %v113 = vpop.f32.mrb[0].mxu0
    %114 = vdwg.mxu0
    %v115 = vld [vmem:[%s2] sm:$0xff]
    %v116 = vld [vmem:[%s2 + $0x8] sm:$0xff]
    %v117 = vld [vmem:[%s2 + $0x10] sm:$0xff]
    %v118 = vld [vmem:[%s2 + $0x18] sm:$0xff]
    %119 = vmatprep.subr.mxu0 0.0
    %120 = vmatpush1.msra.mxu0 %v115
    %121 = vmatprep.subr.mxu0 0.0
    %122 = vmatpush1.msra.mxu0 %v116
    %123 = vmatprep.subr.mxu0 0.0
    %124 = vmatpush1.msra.mxu0 %v117
    %125 = vmatprep.subr.mxu0 0.0
    %126 = vmatpush1.msra.mxu0 %v118
    %127 = vmatprep.subr.mxu0 0.0
    %128 = vmatpush1.msra.mxu0 0.0
    %129 = vmatprep.subr.mxu0 0.0
    %130 = vmatpush1.msra.mxu0 0.0
    %131 = vmatprep.subr.mxu0 0.0
    %132 = vmatpush1.msra.mxu0 0.0
    %133 = vmatprep.subr.mxu0 0.0
    %134 = vmatpush1.msra.mxu0 0.0
    %135 = vmatprep.subr.mxu0 0.0
    %136 = vmatpush1.msra.mxu0 0.0
    %137 = vmatprep.subr.mxu0 0.0
    %138 = vmatpush1.msra.mxu0 0.0
    %139 = vmatprep.subr.mxu0 0.0
    %140 = vmatpush1.msra.mxu0 0.0
    %141 = vmatprep.subr.mxu0 0.0
    %142 = vmatpush1.msra.mxu0 0.0
    %143 = vmatprep.subr.mxu0 0.0
    %144 = vmatpush1.msra.mxu0 0.0
    %145 = vmatprep.subr.mxu0 0.0
    %146 = vmatpush1.msra.mxu0 0.0
    %147 = vmatprep.subr.mxu0 0.0
    %148 = vmatpush1.msra.mxu0 0.0
    %149 = vmatprep.subr.mxu0 0.0
    %150 = vmatpush1.msra.mxu0 0.0
    %151 = vmatprep.subr.mxu0 0.0
    %152 = vmatpush1.msra.mxu0 0.0
    %153 = vmatprep.subr.mxu0 0.0
    %154 = vmatpush1.msra.mxu0 0.0
    %155 = vmatprep.subr.mxu0 0.0
    %156 = vmatpush1.msra.mxu0 0.0
    %157 = vmatprep.subr.mxu0 0.0
    %158 = vmatpush1.msra.mxu0 0.0
    %159 = vmatprep.subr.mxu0 0.0
    %160 = vmatpush1.msra.mxu0 0.0
    %161 = vmatprep.subr.mxu0 0.0
    %162 = vmatpush1.msra.mxu0 0.0
    %163 = vmatprep.subr.mxu0 0.0
    %164 = vmatpush1.msra.mxu0 0.0
    %165 = vmatprep.subr.mxu0 0.0
    %166 = vmatpush1.msra.mxu0 0.0
    %167 = vmatprep.subr.mxu0 0.0
    %168 = vmatpush1.msra.mxu0 0.0
    %169 = vmatprep.subr.mxu0 0.0
    %170 = vmatpush1.msra.mxu0 0.0
    %171 = vmatprep.subr.mxu0 0.0
    %172 = vmatpush1.msra.mxu0 0.0
    %173 = vmatprep.subr.mxu0 0.0
    %174 = vmatpush1.msra.mxu0 0.0
    %175 = vmatprep.subr.mxu0 0.0
    %176 = vmatpush1.msra.mxu0 0.0
    %177 = vmatprep.subr.mxu0 0.0
    %178 = vmatpush1.msra.mxu0 0.0
    %179 = vmatprep.subr.mxu0 0.0
    %180 = vmatpush1.msra.mxu0 0.0
    %181 = vmatprep.subr.mxu0 0.0
    %182 = vmatpush1.msra.mxu0 0.0
    %183 = vmatprep.mubr.f32.mxu0 0.0
    %184 = vmatmul.mubr.f32.gmra.mrb[0].mxu0 %v35
    %v185 = vpop.f32.mrb[0].mxu0
    %v186 = vadd.f32 0.0, %v185
    %v187 = vpop.f32.mrb[0].mxu0
    %188 = vmatprep.mubr.f32.mxu0 0.0
    %189 = vmatmul.mubr.f32.gmra.mrb[0].mxu0 %v38
    %v190 = vpop.f32.mrb[0].mxu0
    %v191 = vadd.f32 0.0, %v190
    %v192 = vpop.f32.mrb[0].mxu0
    %193 = vdwg.mxu0
    %v194 = vxor.u32 %v186, 2147483648
    %v195 = vxor.u32 %v191, 2147483648
    %v196 = vmul.f32 %v194, 1.442695
    %v197 = vpow.pop %v196
    %v198 = vmul.f32 %v195, 1.442695
    %v199 = vpow.pop %v198
    %v200 = vadd.f32 %v197, 1.0
    %v201 = vadd.f32 %v199, 1.0
    %v202 = vrcp.pop %v200
    %v203 = vmul.f32 1.0, %v202
    %v204 = vrcp.pop %v201
    %v205 = vmul.f32 1.0, %v204
    %v206 = vmul.f32 %v186, %v203
    %v207 = vmul.f32 %v191, %v205
    %v208 = vmul.f32 %v107, %v206
    %v209 = vmul.f32 %v112, %v207
    %v210 = vld [vmem:[%s3] sm:$0xff]
    %v211 = vld [vmem:[%s3 + $0x8] sm:$0xff]
    %v212 = vld [vmem:[%s3 + $0x10] sm:$0xff]
    %v213 = vld [vmem:[%s3 + $0x18] sm:$0xff]
    %v214 = vld [vmem:[%s3 + $0x20] sm:$0xff]
    %v215 = vld [vmem:[%s3 + $0x28] sm:$0xff]
    %v216 = vld [vmem:[%s3 + $0x30] sm:$0xff]
    %v217 = vld [vmem:[%s3 + $0x38] sm:$0xff]
    %v218 = vld [vmem:[%s3 + $0x40] sm:$0xff]
    %v219 = vld [vmem:[%s3 + $0x48] sm:$0xff]
    %v220 = vld [vmem:[%s3 + $0x50] sm:$0xff]
    %v221 = vld [vmem:[%s3 + $0x58] sm:$0xff]
    %v222 = vld [vmem:[%s3 + $0x60] sm:$0xff]
    %v223 = vld [vmem:[%s3 + $0x68] sm:$0xff]
    %v224 = vld [vmem:[%s3 + $0x70] sm:$0xff]
    %v225 = vld [vmem:[%s3 + $0x78] sm:$0xff]
    %226 = vmatprep.subr.mxu0 0.0
    %227 = vmatpush1.msra.mxu0 %v210
    %228 = vmatprep.subr.mxu0 0.0
    %229 = vmatpush1.msra.mxu0 %v211
    %230 = vmatprep.subr.mxu0 0.0
    %231 = vmatpush1.msra.mxu0 %v212
    %232 = vmatprep.subr.mxu0 0.0
    %233 = vmatpush1.msra.mxu0 %v213
    %234 = vmatprep.subr.mxu0 0.0
    %235 = vmatpush1.msra.mxu0 %v214
    %236 = vmatprep.subr.mxu0 0.0
    %237 = vmatpush1.msra.mxu0 %v215
    %238 = vmatprep.subr.mxu0 0.0
    %239 = vmatpush1.msra.mxu0 %v216
    %240 = vmatprep.subr.mxu0 0.0
    %241 = vmatpush1.msra.mxu0 %v217
    %242 = vmatprep.subr.mxu0 0.0
    %243 = vmatpush1.msra.mxu0 %v218
    %244 = vmatprep.subr.mxu0 0.0
    %245 = vmatpush1.msra.mxu0 %v219
    %246 = vmatprep.subr.mxu0 0.0
    %247 = vmatpush1.msra.mxu0 %v220
    %248 = vmatprep.subr.mxu0 0.0
    %249 = vmatpush1.msra.mxu0 %v221
    %250 = vmatprep.subr.mxu0 0.0
    %251 = vmatpush1.msra.mxu0 %v222
    %252 = vmatprep.subr.mxu0 0.0
    %253 = vmatpush1.msra.mxu0 %v223
    %254 = vmatprep.subr.mxu0 0.0
    %255 = vmatpush1.msra.mxu0 %v224
    %256 = vmatprep.subr.mxu0 0.0
    %257 = vmatpush1.msra.mxu0 %v225
    %258 = vmatprep.subr.mxu0 0.0
    %259 = vmatpush1.msra.mxu0 0.0
    %260 = vmatprep.subr.mxu0 0.0
    %261 = vmatpush1.msra.mxu0 0.0
    %262 = vmatprep.subr.mxu0 0.0
    %263 = vmatpush1.msra.mxu0 0.0
    %264 = vmatprep.subr.mxu0 0.0
    %265 = vmatpush1.msra.mxu0 0.0
    %266 = vmatprep.subr.mxu0 0.0
    %267 = vmatpush1.msra.mxu0 0.0
    %268 = vmatprep.subr.mxu0 0.0
    %269 = vmatpush1.msra.mxu0 0.0
    %270 = vmatprep.subr.mxu0 0.0
    %271 = vmatpush1.msra.mxu0 0.0
    %272 = vmatprep.subr.mxu0 0.0
    %273 = vmatpush1.msra.mxu0 0.0
    %274 = vmatprep.subr.mxu0 0.0
    %275 = vmatpush1.msra.mxu0 0.0
    %276 = vmatprep.subr.mxu0 0.0
    %277 = vmatpush1.msra.mxu0 0.0
    %278 = vmatprep.subr.mxu0 0.0
    %279 = vmatpush1.msra.mxu0 0.0
    %280 = vmatprep.subr.mxu0 0.0
    %281 = vmatpush1.msra.mxu0 0.0
    %282 = vmatprep.subr.mxu0 0.0
    %283 = vmatpush1.msra.mxu0 0.0
    %284 = vmatprep.subr.mxu0 0.0
    %285 = vmatpush1.msra.mxu0 0.0
    %286 = vmatprep.subr.mxu0 0.0
    %287 = vmatpush1.msra.mxu0 0.0
    %288 = vmatprep.subr.mxu0 0.0
    %289 = vmatpush1.msra.mxu0 0.0
    %290 = vmatprep.mubr.f32.mxu0 0.0
    %291 = vmatmul.mubr.f32.gmra.mrb[0].mxu0 %v208
    %v292 = vpop.f32.mrb[0].mxu0
    %v293 = vadd.f32 0.0, %v292
    %v294 = vpop.f32.mrb[0].mxu0
    %295 = vmatprep.mubr.f32.mxu0 0.0
    %296 = vmatmul.mubr.f32.gmra.mrb[0].mxu0 %v209
    %v297 = vpop.f32.mrb[0].mxu0
    %v298 = vadd.f32 0.0, %v297
    %v299 = vpop.f32.mrb[0].mxu0
    %300 = vdwg.mxu0
    %v301 = vadd.f32 %v25, %v293
    %v302 = vadd.f32 %v26, %v298
    %303 = vst.msk [vmem:[#allocation2] sm:$0xff] %vm33, %v301
    %304 = vst.msk [vmem:[#allocation2 + $0x8] sm:$0xff] %vm33, %v302
    // Predicated region
    $region22: #{tpu_custom_call.1} parent=1 // pred_check
      _
    $region23: #{tpu_custom_call.1} parent=1 // pred_check_branch
      %306 = sbr.rel (0) target = $region25
    $region24: #{tpu_custom_call.1} parent=1 // pred_region
      %s308 = ssub.s32 256, 256
      %309 = vsyncadd [#allocation3], %s308
      %s310 = sshll.u32 [#allocation2], 4
      %s311 = int_to_ptr.vmem [resolvable:$true] %s310
      %316 = dma.vmem_to_hbm [thread:$0]  %s311, 256, %s4, [#allocation3], 128, 128, 8
    $region25: #{tpu_custom_call.1} parent=1 // pred_fallthru
      _
    // Predicated region
    $region26: #{tpu_custom_call.1} parent=1 // pred_check
      _
    $region27: #{tpu_custom_call.1} parent=1 // pred_check_branch
      %318 = sbr.rel (0) target = $region29
    $region28: #{tpu_custom_call.1} parent=1 // pred_region
      %319 = dma.done [#allocation3], 256
    $region29: #{tpu_custom_call.1} parent=1 // pred_fallthru
      _
    %320 = vsyncpa [#allocation3], 1

</llo_original>
